<compile_context>
chip_gen: v7x
topology: tpu7x:2x2x1
jax: 0.10.0
libtpu: 0.0.40
codegen_flags: <defaults>
</compile_context>

<pallas_src>
import functools

import jax
import jax.numpy as jnp
from jax.experimental import pallas as pl
from jax.experimental.pallas import tpu as pltpu


def _sublayer_connection_kernel(x_ref, w_ref, b_ref, gamma_ref, beta_ref,
                                o_ref, *, hidden, eps):
    # x_ref: (RT, H) native dtype   w_ref: (H, H) native dtype (bf16 ok)
    # b/gamma/beta: (1, H) f32      o_ref: (RT, H)
    x_nat = x_ref[...]

    # --- sublayer(x): Linear(H -> H) on the MXU, f32 accumulation ---
    # Native-dtype operands (no in-kernel weight cast); f32 accumulate.
    y = jnp.dot(x_nat, w_ref[...], preferred_element_type=jnp.float32)
    y = y + b_ref[...]

    # --- dropout (eval mode => identity) + residual, in f32 ---
    # TODO(synk): training-mode dropout would use pltpu.prng_seed/prng_random_bits.
    z = x_nat.astype(jnp.float32) + y

    # --- LayerNorm with unbiased std (torch.std default, ddof=1) ---
    mean = jnp.mean(z, axis=-1, keepdims=True)
    d = z - mean
    var = jnp.sum(d * d, axis=-1, keepdims=True) * (1.0 / (hidden - 1))
    std = jnp.sqrt(var)
    # Per-row inverse (EUP/scalar-ish work on a (RT,1) column) + broadcast mul,
    # instead of a full (RT,H) VALU divide.
    inv = pl.reciprocal(std + eps, approx=False)
    out = gamma_ref[...] * (d * inv) + beta_ref[...]

    o_ref[...] = out.astype(o_ref.dtype)


def sublayer_connection(x, w, b, gamma, beta, *, eps=1e-6, row_tile=256,
                        compute_dtype=None):
    """Fused SublayerConnection forward.

    x: (B, S, H).  w: (H, H), b/gamma/beta: (H,).
    compute_dtype: optional dtype (e.g. jnp.bfloat16) to cast x/W to ONCE on
    the host side for the MXU path; residual + LayerNorm math stays f32.
    """
    B, S, H = x.shape
    rows = B * S
    out_dtype = x.dtype

    x2 = x.reshape(rows, H)
    if compute_dtype is not None:
        x2 = x2.astype(compute_dtype)
        w = w.astype(compute_dtype)

    # Row tile: large and MXU-friendly for big inputs, capped (and kept a
    # multiple of 8 sublanes) for small ones; pad ragged row counts.
    rt = min(row_tile, max(8, rows))
    rt = ((rt + 7) // 8) * 8
    rows_p = pl.cdiv(rows, rt) * rt
    if rows_p != rows:
        x2 = jnp.pad(x2, ((0, rows_p - rows), (0, 0)))

    # Small params stay f32 (the LayerNorm / bias math is f32).
    b2 = b.astype(jnp.float32).reshape(1, H)
    g2 = gamma.astype(jnp.float32).reshape(1, H)
    be2 = beta.astype(jnp.float32).reshape(1, H)

    kernel = functools.partial(_sublayer_connection_kernel, hidden=H, eps=eps)

    # TODO(synk): for very large H where the (H, H) weight no longer fits
    # resident in VMEM (esp. v7x 64 MiB), add a K-dimension grid axis with an
    # f32 accumulator scratch instead of a single resident W block.
    def build(single_buffer_w):
        # W's index_map is constant -> single-buffer it to save a W-sized
        # chunk of VMEM (no pipelining benefit from double-buffering it).
        w_kwargs = dict(pipeline_mode=pl.Buffered(1)) if single_buffer_w else {}
        return pl.pallas_call(
            kernel,
            out_shape=jax.ShapeDtypeStruct((rows_p, H), out_dtype),
            grid_spec=pltpu.PrefetchScalarGridSpec(
                num_scalar_prefetch=0,
                grid=(rows_p // rt,),
                in_specs=[
                    pl.BlockSpec((rt, H), lambda i: (i, 0)),            # x rows
                    pl.BlockSpec((H, H), lambda i: (0, 0), **w_kwargs),  # W
                    pl.BlockSpec((1, H), lambda i: (0, 0)),             # bias
                    pl.BlockSpec((1, H), lambda i: (0, 0)),             # a_2
                    pl.BlockSpec((1, H), lambda i: (0, 0)),             # b_2
                ],
                out_specs=pl.BlockSpec((rt, H), lambda i: (i, 0)),
            ),
            compiler_params=pltpu.CompilerParams(
                dimension_semantics=("parallel",),
                vmem_limit_bytes=64 * 1024 * 1024,
            ),
        )

    try:
        out = build(single_buffer_w=True)(x2, w, b2, g2, be2)
    except Exception:
        # Fallback for environments where pipeline_mode=pl.Buffered(1) on a
        # constant block is not supported; semantics are identical.
        out = build(single_buffer_w=False)(x2, w, b2, g2, be2)

    return out[:rows].reshape(B, S, H)


def _reference(x, w, b, gamma, beta, eps=1e-6):
    # Pure-JAX reference mirroring the PyTorch module (eval-mode dropout).
    y = jnp.einsum("bsh,hk->bsk", x, w) + b
    z = x + y
    mean = jnp.mean(z, axis=-1, keepdims=True)
    d = z - mean
    var = jnp.sum(d * d, axis=-1, keepdims=True) / (x.shape[-1] - 1)
    std = jnp.sqrt(var)
    return gamma * d / (std + eps) + beta


if __name__ == "__main__":
    key = jax.random.PRNGKey(0)
    B, S, H = 2, 8, 32
    k_x, k_w, k_b = jax.random.split(key, 3)

    x = jax.random.normal(k_x, (B, S, H), dtype=jnp.float32)
    # Deterministic parameter init (synthetic; not loaded from checkpoint).
    w = jax.random.normal(k_w, (H, H), dtype=jnp.float32) * 0.02
    b = jax.random.normal(k_b, (H,), dtype=jnp.float32) * 0.02
    gamma = jnp.ones((H,), dtype=jnp.float32)   # LayerNorm a_2
    beta = jnp.zeros((H,), dtype=jnp.float32)   # LayerNorm b_2

    out = sublayer_connection(x, w, b, gamma, beta)
    out = jax.block_until_ready(out)

    ref = _reference(x, w, b, gamma, beta)
    assert out.shape == (B, S, H)
    assert jnp.allclose(out, ref, atol=1e-4, rtol=1e-4), "mismatch vs reference"
    print("KERNEL_OK")
</pallas_src>

<mosaic_0001>
module attributes {stable_mosaic.version = 11 : i64} {
  func.func @_sublayer_connection_kernel(%arg0: i32, %arg1: memref<16x32xf32, #tpu.memory_space<vmem>>, %arg2: memref<32x32xf32, #tpu.memory_space<vmem>>, %arg3: memref<1x32xf32, #tpu.memory_space<vmem>>, %arg4: memref<1x32xf32, #tpu.memory_space<vmem>>, %arg5: memref<1x32xf32, #tpu.memory_space<vmem>>, %arg6: memref<16x32xf32, #tpu.memory_space<vmem>>) attributes {dimension_semantics = [#tpu.dimension_semantics<parallel>], iteration_bounds = array<i64: 1>, scalar_prefetch = 0 : i64, scratch_operands = 0 : i64, tpu.core_type = #tpu.core_type<tc>, window_params = [{transform_indices = @transform_0, window_bounds = array<i64: 16, 32>}, {pipeline_mode = #tpu.pipeline_mode<synchronous>, transform_indices = @transform_1, window_bounds = array<i64: 32, 32>}, {pipeline_mode = #tpu.pipeline_mode<synchronous>, transform_indices = @transform_2, window_bounds = array<i64: 1, 32>}, {pipeline_mode = #tpu.pipeline_mode<synchronous>, transform_indices = @transform_3, window_bounds = array<i64: 1, 32>}, {pipeline_mode = #tpu.pipeline_mode<synchronous>, transform_indices = @transform_4, window_bounds = array<i64: 1, 32>}, {transform_indices = @transform_5, window_bounds = array<i64: 16, 32>}]} {
    %c0 = arith.constant 0 : index
    %c0_0 = arith.constant 0 : index
    %0 = vector.load %arg1[%c0, %c0_0] : memref<16x32xf32, #tpu.memory_space<vmem>>, vector<16x32xf32>
    %c0_1 = arith.constant 0 : index
    %c0_2 = arith.constant 0 : index
    %1 = vector.load %arg2[%c0_1, %c0_2] : memref<32x32xf32, #tpu.memory_space<vmem>>, vector<32x32xf32>
    %cst = arith.constant dense<0.000000e+00> : vector<16x32xf32>
    %2 = tpu.matmul %0, %1, %cst {dimension_numbers = #tpu.dot_dimension_numbers<[1], [0], [0], [1], [0, 0, 1, 1], [], []>} : vector<16x32xf32>, vector<32x32xf32>, vector<16x32xf32> -> vector<16x32xf32>
    %c0_3 = arith.constant 0 : index
    %c0_4 = arith.constant 0 : index
    %3 = vector.load %arg3[%c0_3, %c0_4] : memref<1x32xf32, #tpu.memory_space<vmem>>, vector<1x32xf32>
    %4 = vector.broadcast %3 : vector<1x32xf32> to vector<16x32xf32>
    %5 = arith.addf %2, %4 : vector<16x32xf32>
    %6 = arith.addf %0, %5 : vector<16x32xf32>
    %cst_5 = arith.constant dense<0.000000e+00> : vector<16xf32>
    %7 = vector.multi_reduction <add>, %6, %cst_5 [1] : vector<16x32xf32> to vector<16xf32>
    %8 = vector.shape_cast %7 : vector<16xf32> to vector<16x1xf32>
    %cst_6 = arith.constant 3.200000e+01 : f32
    %9 = vector.broadcast %cst_6 : f32 to vector<16x1xf32>
    %10 = arith.divf %8, %9 : vector<16x1xf32>
    %11 = vector.broadcast %10 : vector<16x1xf32> to vector<16x32xf32>
    %12 = arith.subf %6, %11 : vector<16x32xf32>
    %13 = arith.mulf %12, %12 : vector<16x32xf32>
    %cst_7 = arith.constant dense<0.000000e+00> : vector<16xf32>
    %14 = vector.multi_reduction <add>, %13, %cst_7 [1] : vector<16x32xf32> to vector<16xf32>
    %15 = vector.shape_cast %14 : vector<16xf32> to vector<16x1xf32>
    %cst_8 = arith.constant 0.0322580636 : f32
    %16 = vector.broadcast %cst_8 : f32 to vector<16x1xf32>
    %17 = arith.mulf %15, %16 : vector<16x1xf32>
    %18 = math.sqrt %17 : vector<16x1xf32>
    %cst_9 = arith.constant 9.99999997E-7 : f32
    %19 = vector.broadcast %cst_9 : f32 to vector<16x1xf32>
    %20 = arith.addf %18, %19 : vector<16x1xf32>
    %21 = tpu.reciprocal %20 : vector<16x1xf32> -> vector<16x1xf32>
    %c0_10 = arith.constant 0 : index
    %c0_11 = arith.constant 0 : index
    %22 = vector.load %arg4[%c0_10, %c0_11] : memref<1x32xf32, #tpu.memory_space<vmem>>, vector<1x32xf32>
    %23 = vector.broadcast %21 : vector<16x1xf32> to vector<16x32xf32>
    %24 = arith.mulf %12, %23 : vector<16x32xf32>
    %25 = vector.broadcast %22 : vector<1x32xf32> to vector<16x32xf32>
    %26 = arith.mulf %25, %24 : vector<16x32xf32>
    %c0_12 = arith.constant 0 : index
    %c0_13 = arith.constant 0 : index
    %27 = vector.load %arg5[%c0_12, %c0_13] : memref<1x32xf32, #tpu.memory_space<vmem>>, vector<1x32xf32>
    %28 = vector.broadcast %27 : vector<1x32xf32> to vector<16x32xf32>
    %29 = arith.addf %26, %28 : vector<16x32xf32>
    %c0_14 = arith.constant 0 : index
    %c0_15 = arith.constant 0 : index
    %30 = vector.load %arg6[%c0_14, %c0_15] : memref<16x32xf32, #tpu.memory_space<vmem>>, vector<16x32xf32>
    tpu.vector_store %arg6[%c0_14, %c0_15], %29 {strides = array<i32>} : memref<16x32xf32, #tpu.memory_space<vmem>>, vector<16x32xf32>,
    return
  }
  func.func @transform_0(%arg0: i32) -> (i32, i32) {
    %c0_i32 = arith.constant 0 : i32
    %c0_i32_0 = arith.constant 0 : i32
    return %arg0, %c0_i32 : i32, i32
  }
  func.func @transform_1(%arg0: i32) -> (i32, i32) {
    %c0_i32 = arith.constant 0 : i32
    %c0_i32_0 = arith.constant 0 : i32
    %c0_i32_1 = arith.constant 0 : i32
    return %c0_i32, %c0_i32_0 : i32, i32
  }
  func.func @transform_2(%arg0: i32) -> (i32, i32) {
    %c0_i32 = arith.constant 0 : i32
    %c0_i32_0 = arith.constant 0 : i32
    %c0_i32_1 = arith.constant 0 : i32
    return %c0_i32, %c0_i32_0 : i32, i32
  }
  func.func @transform_3(%arg0: i32) -> (i32, i32) {
    %c0_i32 = arith.constant 0 : i32
    %c0_i32_0 = arith.constant 0 : i32
    %c0_i32_1 = arith.constant 0 : i32
    return %c0_i32, %c0_i32_0 : i32, i32
  }
  func.func @transform_4(%arg0: i32) -> (i32, i32) {
    %c0_i32 = arith.constant 0 : i32
    %c0_i32_0 = arith.constant 0 : i32
    %c0_i32_1 = arith.constant 0 : i32
    return %c0_i32, %c0_i32_0 : i32, i32
  }
  func.func @transform_5(%arg0: i32) -> (i32, i32) {
    %c0_i32 = arith.constant 0 : i32
    %c0_i32_0 = arith.constant 0 : i32
    return %arg0, %c0_i32 : i32, i32
  }
}

module attributes {stable_mosaic.version = 11 : i64} {
  func.func @_sublayer_connection_kernel(%arg0: i32, %arg1: memref<16x32xf32, #tpu.memory_space<vmem>>, %arg2: memref<32x32xf32, #tpu.memory_space<vmem>>, %arg3: memref<1x32xf32, #tpu.memory_space<vmem>>, %arg4: memref<1x32xf32, #tpu.memory_space<vmem>>, %arg5: memref<1x32xf32, #tpu.memory_space<vmem>>, %arg6: memref<16x32xf32, #tpu.memory_space<vmem>>) attributes {dimension_semantics = [#tpu.dimension_semantics<parallel>], iteration_bounds = array<i64: 1>, scalar_prefetch = 0 : i64, scratch_operands = 0 : i64, tpu.core_type = #tpu.core_type<tc>, window_params = [{transform_indices = @transform_0, window_bounds = array<i64: 16, 32>}, {pipeline_mode = #tpu.pipeline_mode<synchronous>, transform_indices = @transform_1, window_bounds = array<i64: 32, 32>}, {pipeline_mode = #tpu.pipeline_mode<synchronous>, transform_indices = @transform_2, window_bounds = array<i64: 1, 32>}, {pipeline_mode = #tpu.pipeline_mode<synchronous>, transform_indices = @transform_3, window_bounds = array<i64: 1, 32>}, {pipeline_mode = #tpu.pipeline_mode<synchronous>, transform_indices = @transform_4, window_bounds = array<i64: 1, 32>}, {transform_indices = @transform_5, window_bounds = array<i64: 16, 32>}]} {
    %c0 = arith.constant 0 : index
    %c0_0 = arith.constant 0 : index
    %0 = vector.load %arg1[%c0, %c0_0] : memref<16x32xf32, #tpu.memory_space<vmem>>, vector<16x32xf32>
    %c0_1 = arith.constant 0 : index
    %c0_2 = arith.constant 0 : index
    %1 = vector.load %arg2[%c0_1, %c0_2] : memref<32x32xf32, #tpu.memory_space<vmem>>, vector<32x32xf32>
    %cst = arith.constant dense<0.000000e+00> : vector<16x32xf32>
    %2 = tpu.matmul %0, %1, %cst {dimension_numbers = #tpu.dot_dimension_numbers<[1], [0], [0], [1], [0, 0, 1, 1], [], []>} : vector<16x32xf32>, vector<32x32xf32>, vector<16x32xf32> -> vector<16x32xf32>
    %c0_3 = arith.constant 0 : index
    %c0_4 = arith.constant 0 : index
    %3 = vector.load %arg3[%c0_3, %c0_4] : memref<1x32xf32, #tpu.memory_space<vmem>>, vector<1x32xf32>
    %4 = vector.broadcast %3 : vector<1x32xf32> to vector<16x32xf32>
    %5 = arith.addf %2, %4 : vector<16x32xf32>
    %6 = arith.addf %0, %5 : vector<16x32xf32>
    %cst_5 = arith.constant dense<0.000000e+00> : vector<16xf32>
    %7 = vector.multi_reduction <add>, %6, %cst_5 [1] : vector<16x32xf32> to vector<16xf32>
    %8 = vector.shape_cast %7 : vector<16xf32> to vector<16x1xf32>
    %cst_6 = arith.constant 3.200000e+01 : f32
    %9 = vector.broadcast %cst_6 : f32 to vector<16x1xf32>
    %10 = arith.divf %8, %9 : vector<16x1xf32>
    %11 = vector.broadcast %10 : vector<16x1xf32> to vector<16x32xf32>
    %12 = arith.subf %6, %11 : vector<16x32xf32>
    %13 = arith.mulf %12, %12 : vector<16x32xf32>
    %cst_7 = arith.constant dense<0.000000e+00> : vector<16xf32>
    %14 = vector.multi_reduction <add>, %13, %cst_7 [1] : vector<16x32xf32> to vector<16xf32>
    %15 = vector.shape_cast %14 : vector<16xf32> to vector<16x1xf32>
    %cst_8 = arith.constant 0.0322580636 : f32
    %16 = vector.broadcast %cst_8 : f32 to vector<16x1xf32>
    %17 = arith.mulf %15, %16 : vector<16x1xf32>
    %18 = math.sqrt %17 : vector<16x1xf32>
    %cst_9 = arith.constant 9.99999997E-7 : f32
    %19 = vector.broadcast %cst_9 : f32 to vector<16x1xf32>
    %20 = arith.addf %18, %19 : vector<16x1xf32>
    %21 = tpu.reciprocal %20 : vector<16x1xf32> -> vector<16x1xf32>
    %c0_10 = arith.constant 0 : index
    %c0_11 = arith.constant 0 : index
    %22 = vector.load %arg4[%c0_10, %c0_11] : memref<1x32xf32, #tpu.memory_space<vmem>>, vector<1x32xf32>
    %23 = vector.broadcast %21 : vector<16x1xf32> to vector<16x32xf32>
    %24 = arith.mulf %12, %23 : vector<16x32xf32>
    %25 = vector.broadcast %22 : vector<1x32xf32> to vector<16x32xf32>
    %26 = arith.mulf %25, %24 : vector<16x32xf32>
    %c0_12 = arith.constant 0 : index
    %c0_13 = arith.constant 0 : index
    %27 = vector.load %arg5[%c0_12, %c0_13] : memref<1x32xf32, #tpu.memory_space<vmem>>, vector<1x32xf32>
    %28 = vector.broadcast %27 : vector<1x32xf32> to vector<16x32xf32>
    %29 = arith.addf %26, %28 : vector<16x32xf32>
    %c0_14 = arith.constant 0 : index
    %c0_15 = arith.constant 0 : index
    %30 = vector.load %arg6[%c0_14, %c0_15] : memref<16x32xf32, #tpu.memory_space<vmem>>, vector<16x32xf32>
    tpu.vector_store %arg6[%c0_14, %c0_15], %29 {strides = array<i32>} : memref<16x32xf32, #tpu.memory_space<vmem>>, vector<16x32xf32>,
    return
  }
  func.func @transform_0(%arg0: i32) -> (i32, i32) {
    %c0_i32 = arith.constant 0 : i32
    %c0_i32_0 = arith.constant 0 : i32
    return %arg0, %c0_i32 : i32, i32
  }
  func.func @transform_1(%arg0: i32) -> (i32, i32) {
    %c0_i32 = arith.constant 0 : i32
    %c0_i32_0 = arith.constant 0 : i32
    %c0_i32_1 = arith.constant 0 : i32
    return %c0_i32, %c0_i32_0 : i32, i32
  }
  func.func @transform_2(%arg0: i32) -> (i32, i32) {
    %c0_i32 = arith.constant 0 : i32
    %c0_i32_0 = arith.constant 0 : i32
    %c0_i32_1 = arith.constant 0 : i32
    return %c0_i32, %c0_i32_0 : i32, i32
  }
  func.func @transform_3(%arg0: i32) -> (i32, i32) {
    %c0_i32 = arith.constant 0 : i32
    %c0_i32_0 = arith.constant 0 : i32
    %c0_i32_1 = arith.constant 0 : i32
    return %c0_i32, %c0_i32_0 : i32, i32
  }
  func.func @transform_4(%arg0: i32) -> (i32, i32) {
    %c0_i32 = arith.constant 0 : i32
    %c0_i32_0 = arith.constant 0 : i32
    %c0_i32_1 = arith.constant 0 : i32
    return %c0_i32, %c0_i32_0 : i32, i32
  }
  func.func @transform_5(%arg0: i32) -> (i32, i32) {
    %c0_i32 = arith.constant 0 : i32
    %c0_i32_0 = arith.constant 0 : i32
    return %arg0, %c0_i32 : i32, i32
  }
}

</mosaic_0001>

<llo_original>
// kernel: tpu_custom_call.1
$region0: #{tpu_custom_call.1}
  #allocation0 [shape = 'u32[]', space=smem, size = 0x4, offset = 0x4, fixed_abs, tag = 'smem constant byte address 0x4 - core index']
  #allocation1 [shape = 'u32[144,128]{1,0:T(1,128)}', space=vmem, size = 0x12000, scoped, tag = 'internal scratch']
  %s0 = inlined_call_operand.hbm [shape: f32[16,32], index: 0, kind: input, shape index: {}]
  %s1 = inlined_call_operand.hbm [shape: f32[32,32], index: 1, kind: input, shape index: {}]
  %s2 = inlined_call_operand.hbm [shape: f32[1,32], index: 2, kind: input, shape index: {}]
  %s3 = inlined_call_operand.hbm [shape: f32[1,32], index: 3, kind: input, shape index: {}]
  %s4 = inlined_call_operand.hbm [shape: f32[1,32], index: 4, kind: input, shape index: {}]
  %s5 = inlined_call_operand.hbm [shape: f32[16,32], index: 5, kind: output, shape index: {}]
  %s6 = sld [smem:[#allocation0]]
  $region50: #{tpu_custom_call.1} parent=0
    _
  %s8 = ssub.s32 1, %s6
  %s9 = scalar_select 0, %s8, %s6
  $region1: #{tpu_custom_call.1} parent=0
    #allocation2 [shape = 'u8[8192]{0}', space=vmem, size = 0x2000, scoped, tag = 'input window, operand 0, single buffered']
    #allocation3 [shape = 's32[1]{0}', space=sflag, size = 0x4, scoped, tag = 'scoped memory for tpu_custom_call.1']
    #allocation4 [shape = 's32[1]{0}', space=sflag, size = 0x4, scoped, tag = 'scoped memory for tpu_custom_call.1']
    #allocation5 [shape = 'u8[16384]{0}', space=vmem, size = 0x4000, scoped, tag = 'input window, operand 1, single buffered']
    #allocation6 [shape = 's32[1]{0}', space=sflag, size = 0x4, scoped, tag = 'scoped memory for tpu_custom_call.1']
    #allocation7 [shape = 'u8[512]{0}', space=vmem, size = 0x400, scoped, tag = 'input window, operand 2, single buffered']
    #allocation8 [shape = 'u8[512]{0}', space=vmem, size = 0x400, scoped, tag = 'input window, operand 3, single buffered']
    #allocation9 [shape = 's32[1]{0}', space=sflag, size = 0x4, scoped, tag = 'scoped memory for tpu_custom_call.1']
    #allocation10 [shape = 'u8[512]{0}', space=vmem, size = 0x400, scoped, tag = 'input window, operand 4, single buffered']
    #allocation11 [shape = 'u8[8192]{0}', space=vmem, size = 0x2000, scoped, tag = 'output window, operand 0, single buffered']
    %10 = vsyncpa [#allocation3], 0
    %11 = vsyncpa [#allocation6], 0
    %12 = vsyncpa [#allocation9], 0
    %13 = vsyncpa [#allocation4], 0
    // Predicated region
    $region2: #{tpu_custom_call.1} parent=1 // pred_check
      _
    $region3: #{tpu_custom_call.1} parent=1 // pred_check_branch
      %15 = sbr.rel (0) target = $region5
    $region4: #{tpu_custom_call.1} parent=1 // pred_region
      %s17 = ssub.s32 256, 256
      %18 = vsyncadd [#allocation3], %s17
      %s19 = sshll.u32 [#allocation2], 4
      %s20 = int_to_ptr.vmem [resolvable:$true] %s19
      %25 = dma.hbm_to_vmem [thread:$0]  %s0, 256, %s20, [#allocation3], 128, 128, 8
    $region5: #{tpu_custom_call.1} parent=1 // pred_fallthru
      _
    // Predicated region
    $region6: #{tpu_custom_call.1} parent=1 // pred_check
      _
    $region7: #{tpu_custom_call.1} parent=1 // pred_check_branch
      %27 = sbr.rel (0) target = $region9
    $region8: #{tpu_custom_call.1} parent=1 // pred_region
      %s29 = ssub.s32 512, 512
      %30 = vsyncadd [#allocation6], %s29
      %s31 = sshll.u32 [#allocation5], 4
      %s32 = int_to_ptr.vmem [resolvable:$true] %s31
      %37 = dma.hbm_to_vmem [thread:$0]  %s1, 512, %s32, [#allocation6], 128, 128, 8
    $region9: #{tpu_custom_call.1} parent=1 // pred_fallthru
      _
    // Predicated region
    $region10: #{tpu_custom_call.1} parent=1 // pred_check
      _
    $region11: #{tpu_custom_call.1} parent=1 // pred_check_branch
      %39 = sbr.rel (0) target = $region13
    $region12: #{tpu_custom_call.1} parent=1 // pred_region
      %s41 = ssub.s32 16, 16
      %42 = vsyncadd [#allocation6], %s41
      %s44 = sshll.u32 [#allocation7], 4
      %s45 = int_to_ptr.vmem [resolvable:$true] %s44
      %47 = dma.hbm_to_vmem [thread:$0]  %s2, 16, %s45, [#allocation6]
    $region13: #{tpu_custom_call.1} parent=1 // pred_fallthru
      _
    // Predicated region
    $region14: #{tpu_custom_call.1} parent=1 // pred_check
      _
    $region15: #{tpu_custom_call.1} parent=1 // pred_check_branch
      %49 = sbr.rel (0) target = $region17
    $region16: #{tpu_custom_call.1} parent=1 // pred_region
      %s51 = ssub.s32 16, 16
      %52 = vsyncadd [#allocation9], %s51
      %s54 = sshll.u32 [#allocation8], 4
      %s55 = int_to_ptr.vmem [resolvable:$true] %s54
      %57 = dma.hbm_to_vmem [thread:$0]  %s3, 16, %s55, [#allocation9]
    $region17: #{tpu_custom_call.1} parent=1 // pred_fallthru
      _
    // Predicated region
    $region18: #{tpu_custom_call.1} parent=1 // pred_check
      _
    $region19: #{tpu_custom_call.1} parent=1 // pred_check_branch
      %59 = sbr.rel (0) target = $region21
    $region20: #{tpu_custom_call.1} parent=1 // pred_region
      %s61 = ssub.s32 16, 16
      %62 = vsyncadd [#allocation9], %s61
      %s64 = sshll.u32 [#allocation10], 4
      %s65 = int_to_ptr.vmem [resolvable:$true] %s64
      %67 = dma.hbm_to_vmem [thread:$0]  %s4, 16, %s65, [#allocation9]
    $region21: #{tpu_custom_call.1} parent=1 // pred_fallthru
      _
    // Predicated region
    $region22: #{tpu_custom_call.1} parent=1 // pred_check
      _
    $region23: #{tpu_custom_call.1} parent=1 // pred_check_branch
      %69 = sbr.rel (0) target = $region25
    $region24: #{tpu_custom_call.1} parent=1 // pred_region
      %70 = dma.done [#allocation3], 256
    $region25: #{tpu_custom_call.1} parent=1 // pred_fallthru
      _
    // Predicated region
    $region26: #{tpu_custom_call.1} parent=1 // pred_check
      _
    $region27: #{tpu_custom_call.1} parent=1 // pred_check_branch
      %72 = sbr.rel (0) target = $region29
    $region28: #{tpu_custom_call.1} parent=1 // pred_region
      %73 = dma.done [#allocation6], 512
    $region29: #{tpu_custom_call.1} parent=1 // pred_fallthru
      _
    // Predicated region
    $region30: #{tpu_custom_call.1} parent=1 // pred_check
      _
    $region31: #{tpu_custom_call.1} parent=1 // pred_check_branch
      %75 = sbr.rel (0) target = $region33
    $region32: #{tpu_custom_call.1} parent=1 // pred_region
      %76 = dma.done [#allocation6], 16
    $region33: #{tpu_custom_call.1} parent=1 // pred_fallthru
      _
    // Predicated region
    $region34: #{tpu_custom_call.1} parent=1 // pred_check
      _
    $region35: #{tpu_custom_call.1} parent=1 // pred_check_branch
      %78 = sbr.rel (0) target = $region37
    $region36: #{tpu_custom_call.1} parent=1 // pred_region
      %79 = dma.done [#allocation9], 16
    $region37: #{tpu_custom_call.1} parent=1 // pred_fallthru
      _
    // Predicated region
    $region38: #{tpu_custom_call.1} parent=1 // pred_check
      _
    $region39: #{tpu_custom_call.1} parent=1 // pred_check_branch
      %81 = sbr.rel (0) target = $region41
    $region40: #{tpu_custom_call.1} parent=1 // pred_region
      %82 = dma.done [#allocation9], 16
    $region41: #{tpu_custom_call.1} parent=1 // pred_fallthru
      _
    %v83 = vld [vmem:[#allocation2] sm:$0xff]
    %v84 = vld [vmem:[#allocation2 + $0x8] sm:$0xff]
    %v85 = vld [vmem:[#allocation5] sm:$0xff]
    %v86 = vld [vmem:[#allocation5 + $0x8] sm:$0xff]
    %v87 = vld [vmem:[#allocation5 + $0x10] sm:$0xff]
    %v88 = vld [vmem:[#allocation5 + $0x18] sm:$0xff]
    %v89 = vld [vmem:[#allocation7] sm:$0x1]
    %v91 = vlaneseq
    %v92 = vshrl.u32 %v91, 7
    %v93 = vsub.s32 0, %v92
    %v94 = vrot.slane %v89, %v93
    %vm96 = vcmask 261120
    %v98 = vsel %vm96, %v83, 0
    %v101 = vsel %vm96, %v84, 0
    %103 = vmatprep.subr.mxu0 0.0
    %104 = vmatpush1.msra.mxu0 %v85
    %105 = vmatprep.subr.mxu0 0.0
    %106 = vmatpush1.msra.mxu0 %v86
    %107 = vmatprep.subr.mxu0 0.0
    %108 = vmatpush1.msra.mxu0 %v87
    %109 = vmatprep.subr.mxu0 0.0
    %110 = vmatpush1.msra.mxu0 %v88
    %111 = vmatprep.subr.mxu0 0.0
    %112 = vmatpush1.msra.mxu0 0.0
    %113 = vmatprep.subr.mxu0 0.0
    %114 = vmatpush1.msra.mxu0 0.0
    %115 = vmatprep.subr.mxu0 0.0
    %116 = vmatpush1.msra.mxu0 0.0
    %117 = vmatprep.subr.mxu0 0.0
    %118 = vmatpush1.msra.mxu0 0.0
    %119 = vmatprep.subr.mxu0 0.0
    %120 = vmatpush1.msra.mxu0 0.0
    %121 = vmatprep.subr.mxu0 0.0
    %122 = vmatpush1.msra.mxu0 0.0
    %123 = vmatprep.subr.mxu0 0.0
    %124 = vmatpush1.msra.mxu0 0.0
    %125 = vmatprep.subr.mxu0 0.0
    %126 = vmatpush1.msra.mxu0 0.0
    %127 = vmatprep.subr.mxu0 0.0
    %128 = vmatpush1.msra.mxu0 0.0
    %129 = vmatprep.subr.mxu0 0.0
    %130 = vmatpush1.msra.mxu0 0.0
    %131 = vmatprep.subr.mxu0 0.0
    %132 = vmatpush1.msra.mxu0 0.0
    %133 = vmatprep.subr.mxu0 0.0
    %134 = vmatpush1.msra.mxu0 0.0
    %135 = vmatprep.subr.mxu0 0.0
    %136 = vmatpush1.msra.mxu0 0.0
    %137 = vmatprep.subr.mxu0 0.0
    %138 = vmatpush1.msra.mxu0 0.0
    %139 = vmatprep.subr.mxu0 0.0
    %140 = vmatpush1.msra.mxu0 0.0
    %141 = vmatprep.subr.mxu0 0.0
    %142 = vmatpush1.msra.mxu0 0.0
    %143 = vmatprep.subr.mxu0 0.0
    %144 = vmatpush1.msra.mxu0 0.0
    %145 = vmatprep.subr.mxu0 0.0
    %146 = vmatpush1.msra.mxu0 0.0
    %147 = vmatprep.subr.mxu0 0.0
    %148 = vmatpush1.msra.mxu0 0.0
    %149 = vmatprep.subr.mxu0 0.0
    %150 = vmatpush1.msra.mxu0 0.0
    %151 = vmatprep.subr.mxu0 0.0
    %152 = vmatpush1.msra.mxu0 0.0
    %153 = vmatprep.subr.mxu0 0.0
    %154 = vmatpush1.msra.mxu0 0.0
    %155 = vmatprep.subr.mxu0 0.0
    %156 = vmatpush1.msra.mxu0 0.0
    %157 = vmatprep.subr.mxu0 0.0
    %158 = vmatpush1.msra.mxu0 0.0
    %159 = vmatprep.subr.mxu0 0.0
    %160 = vmatpush1.msra.mxu0 0.0
    %161 = vmatprep.subr.mxu0 0.0
    %162 = vmatpush1.msra.mxu0 0.0
    %163 = vmatprep.subr.mxu0 0.0
    %164 = vmatpush1.msra.mxu0 0.0
    %165 = vmatprep.subr.mxu0 0.0
    %166 = vmatpush1.msra.mxu0 0.0
    %167 = vmatprep.mubr.f32.mxu0 0.0
    %168 = vmatmul.mubr.f32.gmra.mrb[0].mxu0 %v98
    %v169 = vpop.f32.mrb[0].mxu0
    %v170 = vadd.f32 %v94, %v169
    %v171 = vpop.f32.mrb[0].mxu0
    %172 = vmatprep.mubr.f32.mxu0 0.0
    %173 = vmatmul.mubr.f32.gmra.mrb[0].mxu0 %v101
    %v174 = vpop.f32.mrb[0].mxu0
    %v175 = vadd.f32 %v94, %v174
    %v176 = vpop.f32.mrb[0].mxu0
    %177 = vdwg.mxu0
    %v178 = vadd.f32 %v83, %v170
    %v179 = vadd.f32 %v84, %v175
    %v180 = vsel %vm96, %v178, 0.0
    %181 = vadd.xlane.f32.xlu0 %v180
    %v182 = vpop.xlane.xlu0 %181
    %v183 = vsel %vm96, %v179, 0.0
    %184 = vadd.xlane.f32.xlu0 %v183
    %v185 = vpop.xlane.xlu0 %184
    %v186 = vrcp.pop 32.0
    %v187 = vmul.f32 %v182, %v186
    %v188 = vmul.f32 %v185, %v186
    %v189 = vsub.f32 %v178, %v187
    %v190 = vsub.f32 %v179, %v188
    %v191 = vmul.f32 %v189, %v189
    %v192 = vmul.f32 %v190, %v190
    %v193 = vsel %vm96, %v191, 0.0
    %194 = vadd.xlane.f32.xlu0 %v193
    %v195 = vpop.xlane.xlu0 %194
    %v196 = vsel %vm96, %v192, 0.0
    %197 = vadd.xlane.f32.xlu0 %v196
    %v198 = vpop.xlane.xlu0 %197
    %v199 = vmul.f32 %v195, 0.032258064
    %v200 = vmul.f32 %v198, 0.032258064
    %v201 = vrsqrt.pop %v199
    %v202 = vmul.f32 %v199, %v201
    %vm203 = vcmp.eq.f32.partialorder %v199, inf
    %v204 = vsel %vm203, %v199, %v202
    %vm205 = vcmp.eq.f32.partialorder %v199, 0.0
    %v206 = vand.u32 %v199, 2147483648
    %v207 = vsel %vm205, %v206, %v204
    %v208 = vrsqrt.pop %v200
    %v209 = vmul.f32 %v200, %v208
    %vm210 = vcmp.eq.f32.partialorder %v200, inf
    %v211 = vsel %vm210, %v200, %v209
    %vm212 = vcmp.eq.f32.partialorder %v200, 0.0
    %v213 = vand.u32 %v200, 2147483648
    %v214 = vsel %vm212, %v213, %v211
    %v215 = vadd.f32 %v207, 1e-06
    %v216 = vadd.f32 %v214, 1e-06
    %v217 = vrcp.pop %v215
    %v218 = vrcp.pop %v216
    %v219 = vld [vmem:[#allocation8] sm:$0x1]
    %v220 = vmul.f32 %v189, %v217
    %v221 = vmul.f32 %v190, %v218
    %v223 = vlaneseq
    %v224 = vshrl.u32 %v223, 7
    %v225 = vsub.s32 0, %v224
    %v226 = vrot.slane %v219, %v225
    %v228 = vmul.f32 %v226, %v220
    %v229 = vmul.f32 %v226, %v221
    %v230 = vld [vmem:[#allocation10] sm:$0x1]
    %v232 = vlaneseq
    %v233 = vshrl.u32 %v232, 7
    %v234 = vsub.s32 0, %v233
    %v235 = vrot.slane %v230, %v234
    %v237 = vadd.f32 %v228, %v235
    %v238 = vadd.f32 %v229, %v235
    %239 = vst.msk [vmem:[#allocation11] sm:$0xff] %vm96, %v237
    %240 = vst.msk [vmem:[#allocation11 + $0x8] sm:$0xff] %vm96, %v238
    // Predicated region
    $region42: #{tpu_custom_call.1} parent=1 // pred_check
      _
    $region43: #{tpu_custom_call.1} parent=1 // pred_check_branch
      %242 = sbr.rel (0) target = $region45
    $region44: #{tpu_custom_call.1} parent=1 // pred_region
      %s244 = ssub.s32 256, 256
      %245 = vsyncadd [#allocation4], %s244
      %s246 = sshll.u32 [#allocation11], 4
      %s247 = int_to_ptr.vmem [resolvable:$true] %s246
      %252 = dma.vmem_to_hbm [thread:$0]  %s247, 256, %s5, [#allocation4], 128, 128, 8
    $region45: #{tpu_custom_call.1} parent=1 // pred_fallthru
      _
    // Predicated region
    $region46: #{tpu_custom_call.1} parent=1 // pred_check
      _
    $region47: #{tpu_custom_call.1} parent=1 // pred_check_branch
      %254 = sbr.rel (0) target = $region49
    $region48: #{tpu_custom_call.1} parent=1 // pred_region
      %255 = dma.done [#allocation4], 256
    $region49: #{tpu_custom_call.1} parent=1 // pred_fallthru
      _
    %256 = vsyncpa [#allocation3], 1
    %257 = vsyncpa [#allocation6], 1
    %258 = vsyncpa [#allocation9], 1
    %259 = vsyncpa [#allocation4], 1

// kernel: tpu_custom_call.1
$region0: #{tpu_custom_call.1}
  #allocation0 [shape = 'u32[]', space=smem, size = 0x4, offset = 0x4, fixed_abs, tag = 'smem constant byte address 0x4 - core index']
  #allocation1 [shape = 'u32[144,128]{1,0:T(1,128)}', space=vmem, size = 0x12000, scoped, tag = 'internal scratch']
  %s0 = inlined_call_operand.hbm [shape: f32[16,32], index: 0, kind: input, shape index: {}]
  %s1 = inlined_call_operand.hbm [shape: f32[32,32], index: 1, kind: input, shape index: {}]
  %s2 = inlined_call_operand.hbm [shape: f32[1,32], index: 2, kind: input, shape index: {}]
  %s3 = inlined_call_operand.hbm [shape: f32[1,32], index: 3, kind: input, shape index: {}]
  %s4 = inlined_call_operand.hbm [shape: f32[1,32], index: 4, kind: input, shape index: {}]
  %s5 = inlined_call_operand.hbm [shape: f32[16,32], index: 5, kind: output, shape index: {}]
  %s6 = sld [smem:[#allocation0]]
  $region50: #{tpu_custom_call.1} parent=0
    _
  %s8 = ssub.s32 1, %s6
  %s9 = scalar_select 0, %s8, %s6
  $region1: #{tpu_custom_call.1} parent=0
    #allocation2 [shape = 'u8[8192]{0}', space=vmem, size = 0x2000, scoped, tag = 'input window, operand 0, single buffered']
    #allocation3 [shape = 's32[1]{0}', space=sflag, size = 0x4, scoped, tag = 'scoped memory for tpu_custom_call.1']
    #allocation4 [shape = 's32[1]{0}', space=sflag, size = 0x4, scoped, tag = 'scoped memory for tpu_custom_call.1']
    #allocation5 [shape = 'u8[16384]{0}', space=vmem, size = 0x4000, scoped, tag = 'input window, operand 1, single buffered']
    #allocation6 [shape = 's32[1]{0}', space=sflag, size = 0x4, scoped, tag = 'scoped memory for tpu_custom_call.1']
    #allocation7 [shape = 'u8[512]{0}', space=vmem, size = 0x400, scoped, tag = 'input window, operand 2, single buffered']
    #allocation8 [shape = 'u8[512]{0}', space=vmem, size = 0x400, scoped, tag = 'input window, operand 3, single buffered']
    #allocation9 [shape = 's32[1]{0}', space=sflag, size = 0x4, scoped, tag = 'scoped memory for tpu_custom_call.1']
    #allocation10 [shape = 'u8[512]{0}', space=vmem, size = 0x400, scoped, tag = 'input window, operand 4, single buffered']
    #allocation11 [shape = 'u8[8192]{0}', space=vmem, size = 0x2000, scoped, tag = 'output window, operand 0, single buffered']
    %10 = vsyncpa [#allocation3], 0
    %11 = vsyncpa [#allocation6], 0
    %12 = vsyncpa [#allocation9], 0
    %13 = vsyncpa [#allocation4], 0
    // Predicated region
    $region2: #{tpu_custom_call.1} parent=1 // pred_check
      _
    $region3: #{tpu_custom_call.1} parent=1 // pred_check_branch
      %15 = sbr.rel (0) target = $region5
    $region4: #{tpu_custom_call.1} parent=1 // pred_region
      %s17 = ssub.s32 256, 256
      %18 = vsyncadd [#allocation3], %s17
      %s19 = sshll.u32 [#allocation2], 4
      %s20 = int_to_ptr.vmem [resolvable:$true] %s19
      %25 = dma.hbm_to_vmem [thread:$0]  %s0, 256, %s20, [#allocation3], 128, 128, 8
    $region5: #{tpu_custom_call.1} parent=1 // pred_fallthru
      _
    // Predicated region
    $region6: #{tpu_custom_call.1} parent=1 // pred_check
      _
    $region7: #{tpu_custom_call.1} parent=1 // pred_check_branch
      %27 = sbr.rel (0) target = $region9
    $region8: #{tpu_custom_call.1} parent=1 // pred_region
      %s29 = ssub.s32 512, 512
      %30 = vsyncadd [#allocation6], %s29
      %s31 = sshll.u32 [#allocation5], 4
      %s32 = int_to_ptr.vmem [resolvable:$true] %s31
      %37 = dma.hbm_to_vmem [thread:$0]  %s1, 512, %s32, [#allocation6], 128, 128, 8
    $region9: #{tpu_custom_call.1} parent=1 // pred_fallthru
      _
    // Predicated region
    $region10: #{tpu_custom_call.1} parent=1 // pred_check
      _
    $region11: #{tpu_custom_call.1} parent=1 // pred_check_branch
      %39 = sbr.rel (0) target = $region13
    $region12: #{tpu_custom_call.1} parent=1 // pred_region
      %s41 = ssub.s32 16, 16
      %42 = vsyncadd [#allocation6], %s41
      %s44 = sshll.u32 [#allocation7], 4
      %s45 = int_to_ptr.vmem [resolvable:$true] %s44
      %47 = dma.hbm_to_vmem [thread:$0]  %s2, 16, %s45, [#allocation6]
    $region13: #{tpu_custom_call.1} parent=1 // pred_fallthru
      _
    // Predicated region
    $region14: #{tpu_custom_call.1} parent=1 // pred_check
      _
    $region15: #{tpu_custom_call.1} parent=1 // pred_check_branch
      %49 = sbr.rel (0) target = $region17
    $region16: #{tpu_custom_call.1} parent=1 // pred_region
      %s51 = ssub.s32 16, 16
      %52 = vsyncadd [#allocation9], %s51
      %s54 = sshll.u32 [#allocation8], 4
      %s55 = int_to_ptr.vmem [resolvable:$true] %s54
      %57 = dma.hbm_to_vmem [thread:$0]  %s3, 16, %s55, [#allocation9]
    $region17: #{tpu_custom_call.1} parent=1 // pred_fallthru
      _
    // Predicated region
    $region18: #{tpu_custom_call.1} parent=1 // pred_check
      _
    $region19: #{tpu_custom_call.1} parent=1 // pred_check_branch
      %59 = sbr.rel (0) target = $region21
    $region20: #{tpu_custom_call.1} parent=1 // pred_region
      %s61 = ssub.s32 16, 16
      %62 = vsyncadd [#allocation9], %s61
      %s64 = sshll.u32 [#allocation10], 4
      %s65 = int_to_ptr.vmem [resolvable:$true] %s64
      %67 = dma.hbm_to_vmem [thread:$0]  %s4, 16, %s65, [#allocation9]
    $region21: #{tpu_custom_call.1} parent=1 // pred_fallthru
      _
    // Predicated region
    $region22: #{tpu_custom_call.1} parent=1 // pred_check
      _
    $region23: #{tpu_custom_call.1} parent=1 // pred_check_branch
      %69 = sbr.rel (0) target = $region25
    $region24: #{tpu_custom_call.1} parent=1 // pred_region
      %70 = dma.done [#allocation3], 256
    $region25: #{tpu_custom_call.1} parent=1 // pred_fallthru
      _
    // Predicated region
    $region26: #{tpu_custom_call.1} parent=1 // pred_check
      _
    $region27: #{tpu_custom_call.1} parent=1 // pred_check_branch
      %72 = sbr.rel (0) target = $region29
    $region28: #{tpu_custom_call.1} parent=1 // pred_region
      %73 = dma.done [#allocation6], 512
    $region29: #{tpu_custom_call.1} parent=1 // pred_fallthru
      _
    // Predicated region
    $region30: #{tpu_custom_call.1} parent=1 // pred_check
      _
    $region31: #{tpu_custom_call.1} parent=1 // pred_check_branch
      %75 = sbr.rel (0) target = $region33
    $region32: #{tpu_custom_call.1} parent=1 // pred_region
      %76 = dma.done [#allocation6], 16
    $region33: #{tpu_custom_call.1} parent=1 // pred_fallthru
      _
    // Predicated region
    $region34: #{tpu_custom_call.1} parent=1 // pred_check
      _
    $region35: #{tpu_custom_call.1} parent=1 // pred_check_branch
      %78 = sbr.rel (0) target = $region37
    $region36: #{tpu_custom_call.1} parent=1 // pred_region
      %79 = dma.done [#allocation9], 16
    $region37: #{tpu_custom_call.1} parent=1 // pred_fallthru
      _
    // Predicated region
    $region38: #{tpu_custom_call.1} parent=1 // pred_check
      _
    $region39: #{tpu_custom_call.1} parent=1 // pred_check_branch
      %81 = sbr.rel (0) target = $region41
    $region40: #{tpu_custom_call.1} parent=1 // pred_region
      %82 = dma.done [#allocation9], 16
    $region41: #{tpu_custom_call.1} parent=1 // pred_fallthru
      _
    %v83 = vld [vmem:[#allocation2] sm:$0xff]
    %v84 = vld [vmem:[#allocation2 + $0x8] sm:$0xff]
    %v85 = vld [vmem:[#allocation5] sm:$0xff]
    %v86 = vld [vmem:[#allocation5 + $0x8] sm:$0xff]
    %v87 = vld [vmem:[#allocation5 + $0x10] sm:$0xff]
    %v88 = vld [vmem:[#allocation5 + $0x18] sm:$0xff]
    %v89 = vld [vmem:[#allocation7] sm:$0x1]
    %v91 = vlaneseq
    %v92 = vshrl.u32 %v91, 7
    %v93 = vsub.s32 0, %v92
    %v94 = vrot.slane %v89, %v93
    %vm96 = vcmask 261120
    %v98 = vsel %vm96, %v83, 0
    %v101 = vsel %vm96, %v84, 0
    %103 = vmatprep.subr.mxu0 0.0
    %104 = vmatpush1.msra.mxu0 %v85
    %105 = vmatprep.subr.mxu0 0.0
    %106 = vmatpush1.msra.mxu0 %v86
    %107 = vmatprep.subr.mxu0 0.0
    %108 = vmatpush1.msra.mxu0 %v87
    %109 = vmatprep.subr.mxu0 0.0
    %110 = vmatpush1.msra.mxu0 %v88
    %111 = vmatprep.subr.mxu0 0.0
    %112 = vmatpush1.msra.mxu0 0.0
    %113 = vmatprep.subr.mxu0 0.0
    %114 = vmatpush1.msra.mxu0 0.0
    %115 = vmatprep.subr.mxu0 0.0
    %116 = vmatpush1.msra.mxu0 0.0
    %117 = vmatprep.subr.mxu0 0.0
    %118 = vmatpush1.msra.mxu0 0.0
    %119 = vmatprep.subr.mxu0 0.0
    %120 = vmatpush1.msra.mxu0 0.0
    %121 = vmatprep.subr.mxu0 0.0
    %122 = vmatpush1.msra.mxu0 0.0
    %123 = vmatprep.subr.mxu0 0.0
    %124 = vmatpush1.msra.mxu0 0.0
    %125 = vmatprep.subr.mxu0 0.0
    %126 = vmatpush1.msra.mxu0 0.0
    %127 = vmatprep.subr.mxu0 0.0
    %128 = vmatpush1.msra.mxu0 0.0
    %129 = vmatprep.subr.mxu0 0.0
    %130 = vmatpush1.msra.mxu0 0.0
    %131 = vmatprep.subr.mxu0 0.0
    %132 = vmatpush1.msra.mxu0 0.0
    %133 = vmatprep.subr.mxu0 0.0
    %134 = vmatpush1.msra.mxu0 0.0
    %135 = vmatprep.subr.mxu0 0.0
    %136 = vmatpush1.msra.mxu0 0.0
    %137 = vmatprep.subr.mxu0 0.0
    %138 = vmatpush1.msra.mxu0 0.0
    %139 = vmatprep.subr.mxu0 0.0
    %140 = vmatpush1.msra.mxu0 0.0
    %141 = vmatprep.subr.mxu0 0.0
    %142 = vmatpush1.msra.mxu0 0.0
    %143 = vmatprep.subr.mxu0 0.0
    %144 = vmatpush1.msra.mxu0 0.0
    %145 = vmatprep.subr.mxu0 0.0
    %146 = vmatpush1.msra.mxu0 0.0
    %147 = vmatprep.subr.mxu0 0.0
    %148 = vmatpush1.msra.mxu0 0.0
    %149 = vmatprep.subr.mxu0 0.0
    %150 = vmatpush1.msra.mxu0 0.0
    %151 = vmatprep.subr.mxu0 0.0
    %152 = vmatpush1.msra.mxu0 0.0
    %153 = vmatprep.subr.mxu0 0.0
    %154 = vmatpush1.msra.mxu0 0.0
    %155 = vmatprep.subr.mxu0 0.0
    %156 = vmatpush1.msra.mxu0 0.0
    %157 = vmatprep.subr.mxu0 0.0
    %158 = vmatpush1.msra.mxu0 0.0
    %159 = vmatprep.subr.mxu0 0.0
    %160 = vmatpush1.msra.mxu0 0.0
    %161 = vmatprep.subr.mxu0 0.0
    %162 = vmatpush1.msra.mxu0 0.0
    %163 = vmatprep.subr.mxu0 0.0
    %164 = vmatpush1.msra.mxu0 0.0
    %165 = vmatprep.subr.mxu0 0.0
    %166 = vmatpush1.msra.mxu0 0.0
    %167 = vmatprep.mubr.f32.mxu0 0.0
    %168 = vmatmul.mubr.f32.gmra.mrb[0].mxu0 %v98
    %v169 = vpop.f32.mrb[0].mxu0
    %v170 = vadd.f32 %v94, %v169
    %v171 = vpop.f32.mrb[0].mxu0
    %172 = vmatprep.mubr.f32.mxu0 0.0
    %173 = vmatmul.mubr.f32.gmra.mrb[0].mxu0 %v101
    %v174 = vpop.f32.mrb[0].mxu0
    %v175 = vadd.f32 %v94, %v174
    %v176 = vpop.f32.mrb[0].mxu0
    %177 = vdwg.mxu0
    %v178 = vadd.f32 %v83, %v170
    %v179 = vadd.f32 %v84, %v175
    %v180 = vsel %vm96, %v178, 0.0
    %181 = vadd.xlane.f32.xlu0 %v180
    %v182 = vpop.xlane.xlu0 %181
    %v183 = vsel %vm96, %v179, 0.0
    %184 = vadd.xlane.f32.xlu0 %v183
    %v185 = vpop.xlane.xlu0 %184
    %v186 = vrcp.pop 32.0
    %v187 = vmul.f32 %v182, %v186
    %v188 = vmul.f32 %v185, %v186
    %v189 = vsub.f32 %v178, %v187
    %v190 = vsub.f32 %v179, %v188
    %v191 = vmul.f32 %v189, %v189
    %v192 = vmul.f32 %v190, %v190
    %v193 = vsel %vm96, %v191, 0.0
    %194 = vadd.xlane.f32.xlu0 %v193
    %v195 = vpop.xlane.xlu0 %194
    %v196 = vsel %vm96, %v192, 0.0
    %197 = vadd.xlane.f32.xlu0 %v196
    %v198 = vpop.xlane.xlu0 %197
    %v199 = vmul.f32 %v195, 0.032258064
    %v200 = vmul.f32 %v198, 0.032258064
    %v201 = vrsqrt.pop %v199
    %v202 = vmul.f32 %v199, %v201
    %vm203 = vcmp.eq.f32.partialorder %v199, inf
    %v204 = vsel %vm203, %v199, %v202
    %vm205 = vcmp.eq.f32.partialorder %v199, 0.0
    %v206 = vand.u32 %v199, 2147483648
    %v207 = vsel %vm205, %v206, %v204
    %v208 = vrsqrt.pop %v200
    %v209 = vmul.f32 %v200, %v208
    %vm210 = vcmp.eq.f32.partialorder %v200, inf
    %v211 = vsel %vm210, %v200, %v209
    %vm212 = vcmp.eq.f32.partialorder %v200, 0.0
    %v213 = vand.u32 %v200, 2147483648
    %v214 = vsel %vm212, %v213, %v211
    %v215 = vadd.f32 %v207, 1e-06
    %v216 = vadd.f32 %v214, 1e-06
    %v217 = vrcp.pop %v215
    %v218 = vrcp.pop %v216
    %v219 = vld [vmem:[#allocation8] sm:$0x1]
    %v220 = vmul.f32 %v189, %v217
    %v221 = vmul.f32 %v190, %v218
    %v223 = vlaneseq
    %v224 = vshrl.u32 %v223, 7
    %v225 = vsub.s32 0, %v224
    %v226 = vrot.slane %v219, %v225
    %v228 = vmul.f32 %v226, %v220
    %v229 = vmul.f32 %v226, %v221
    %v230 = vld [vmem:[#allocation10] sm:$0x1]
    %v232 = vlaneseq
    %v233 = vshrl.u32 %v232, 7
    %v234 = vsub.s32 0, %v233
    %v235 = vrot.slane %v230, %v234
    %v237 = vadd.f32 %v228, %v235
    %v238 = vadd.f32 %v229, %v235
    %239 = vst.msk [vmem:[#allocation11] sm:$0xff] %vm96, %v237
    %240 = vst.msk [vmem:[#allocation11 + $0x8] sm:$0xff] %vm96, %v238
    // Predicated region
    $region42: #{tpu_custom_call.1} parent=1 // pred_check
      _
    $region43: #{tpu_custom_call.1} parent=1 // pred_check_branch
      %242 = sbr.rel (0) target = $region45
    $region44: #{tpu_custom_call.1} parent=1 // pred_region
      %s244 = ssub.s32 256, 256
      %245 = vsyncadd [#allocation4], %s244
      %s246 = sshll.u32 [#allocation11], 4
      %s247 = int_to_ptr.vmem [resolvable:$true] %s246
      %252 = dma.vmem_to_hbm [thread:$0]  %s247, 256, %s5, [#allocation4], 128, 128, 8
    $region45: #{tpu_custom_call.1} parent=1 // pred_fallthru
      _
    // Predicated region
    $region46: #{tpu_custom_call.1} parent=1 // pred_check
      _
    $region47: #{tpu_custom_call.1} parent=1 // pred_check_branch
      %254 = sbr.rel (0) target = $region49
    $region48: #{tpu_custom_call.1} parent=1 // pred_region
      %255 = dma.done [#allocation4], 256
    $region49: #{tpu_custom_call.1} parent=1 // pred_fallthru
      _
    %256 = vsyncpa [#allocation3], 1
    %257 = vsyncpa [#allocation6], 1
    %258 = vsyncpa [#allocation9], 1
    %259 = vsyncpa [#allocation4], 1

</llo_original>
